<compile_context>
chip_gen: v5e
topology: v5e:2x2
jax: 0.10.0
libtpu: 0.0.40
codegen_flags: <defaults>
</compile_context>

<pallas_src>
import functools

import jax
import jax.numpy as jnp
from jax.experimental import pallas as pl
from jax.experimental.pallas import tpu as pltpu

NUM_FEATURES = 100   # 5 * 5 * 4
NUM_LOGITS = 5       # policy head width
VALUE_LANE = 5       # lane holding tanh(value)
OUT_W = 8            # fused output width (lanes 6:7 unused / zero)


def _round_up(n, m):
    return ((n + m - 1) // m) * m


def mininet_kernel(x_ref, w_ref, b_ref, out_ref):
    # x_ref:   (TB, 100) f32
    # w_ref:   (100, 8)  f32   fused [W1 | W2 | 0]
    # b_ref:   (1, 8)    f32   fused [b1 | b2 | 0]
    # out_ref: (TB, 8)   f32   lanes 0:5 = log_probs, lane 5 = tanh(value)
    h = jnp.dot(x_ref[...], w_ref[...], preferred_element_type=jnp.float32)
    h = h + b_ref[...]

    # Single-vreg lane mask, broadcast by jnp.where (cheap on all generations).
    lane = jax.lax.broadcasted_iota(jnp.int32, (1, OUT_W), 1)
    is_logit = lane < NUM_LOGITS

    # Stable log_softmax over the 5 real logit lanes only.
    masked = jnp.where(is_logit, h, jnp.float32(-jnp.inf))
    m = jnp.max(masked, axis=1, keepdims=True)
    sum_exp = jnp.sum(jnp.exp(masked - m), axis=1, keepdims=True)   # exp(-inf)=0
    logp = (h - m) - jnp.log(sum_exp)

    # Value head: tanh of fused column 5 (EUP op; other lanes discarded).
    # TODO(synk): if a v7x bundle dump shows EUP as the binding slot, pack the
    # per-row tanh/log inputs across rows into lanes (one XLU transpose per
    # 128 rows) so one EUP push covers 128 rows instead of 8.
    v = jnp.tanh(h)

    out_ref[...] = jnp.where(
        is_logit, logp, jnp.where(lane == VALUE_LANE, v, jnp.float32(0.0))
    )


def fuse_params(w1, b1, w2, b2):
    """Fuse the two heads into one (100, 8) weight / (1, 8) bias.

    Call once at parameter-init time (outside the jitted per-call path).
    w1: (100, 5), b1: (5,), w2: (100, 1), b2: (1,) -- stored as
    (in_features, out_features), i.e. transposed relative to nn.Linear.
    """
    w = jnp.zeros((NUM_FEATURES, OUT_W), jnp.float32)
    w = w.at[:, :NUM_LOGITS].set(w1.astype(jnp.float32))
    w = w.at[:, VALUE_LANE:VALUE_LANE + 1].set(w2.astype(jnp.float32))
    b = jnp.zeros((1, OUT_W), jnp.float32)
    b = b.at[0, :NUM_LOGITS].set(b1.astype(jnp.float32))
    b = b.at[0, VALUE_LANE].set(b2.astype(jnp.float32)[0])
    return w, b


@functools.partial(jax.jit, static_argnames=("tile_b",))
def mininet_forward(x, w_fused, b_fused, *, tile_b=1024):
    """x: (B, 4, 5, 5) f32 (NCHW). Returns (log_probs (B, 5), value (B, 1))."""
    B = x.shape[0]
    if B == 0:
        return (jnp.zeros((0, NUM_LOGITS), jnp.float32),
                jnp.zeros((0, 1), jnp.float32))

    x_flat = x.reshape(B, NUM_FEATURES).astype(jnp.float32)

    # Batch tiling: even split into >= 2 tiles (feeds both v7x TensorCores),
    # each tile a multiple of 8 rows.  Tiny batches use one full-array block.
    if B <= 8:
        tb = B
        num_tiles = 1
    else:
        num_tiles = pl.cdiv(B, tile_b)
        if num_tiles == 1 and B >= 16:
            num_tiles = 2
        tb = _round_up(pl.cdiv(B, num_tiles), 8)
        num_tiles = pl.cdiv(B, tb)
    # A ragged last block is fine: Pallas clamps the edge DMA reads and drops
    # out-of-bounds writes, so no batch padding copy is ever materialized.

    out = pl.pallas_call(
        mininet_kernel,
        out_shape=jax.ShapeDtypeStruct((B, OUT_W), jnp.float32),
        grid_spec=pltpu.PrefetchScalarGridSpec(
            num_scalar_prefetch=0,
            grid=(num_tiles,),
            in_specs=[
                pl.BlockSpec((tb, NUM_FEATURES), lambda i: (i, 0)),
                pl.BlockSpec((NUM_FEATURES, OUT_W), lambda i: (0, 0)),
                pl.BlockSpec((1, OUT_W), lambda i: (0, 0)),
            ],
            out_specs=pl.BlockSpec((tb, OUT_W), lambda i: (i, 0)),
        ),
        compiler_params=pltpu.CompilerParams(
            dimension_semantics=("parallel",),
        ),
    )(x_flat, w_fused, b_fused)

    logp = out[:, :NUM_LOGITS]
    v = out[:, VALUE_LANE:VALUE_LANE + 1]
    return logp, v


def init_params(key):
    """Deterministic init mimicking nn.Linear's uniform(-1/sqrt(fan_in), +)."""
    k1, k2, k3, k4 = jax.random.split(key, 4)
    bound = 1.0 / jnp.sqrt(float(NUM_FEATURES))
    w1 = jax.random.uniform(k1, (NUM_FEATURES, NUM_LOGITS), jnp.float32, -bound, bound)
    b1 = jax.random.uniform(k2, (NUM_LOGITS,), jnp.float32, -bound, bound)
    w2 = jax.random.uniform(k3, (NUM_FEATURES, 1), jnp.float32, -bound, bound)
    b2 = jax.random.uniform(k4, (1,), jnp.float32, -bound, bound)
    return w1, b1, w2, b2


def _reference(x, w1, b1, w2, b2):
    x_flat = x.reshape(x.shape[0], NUM_FEATURES)
    hp = x_flat @ w1 + b1
    return jax.nn.log_softmax(hp, axis=1), jnp.tanh(x_flat @ w2 + b2)


if __name__ == "__main__":
    key = jax.random.PRNGKey(0)
    k_x, k_p, k_big, k_rag = jax.random.split(key, 4)

    w1, b1, w2, b2 = init_params(k_p)
    w_fused, b_fused = fuse_params(w1, b1, w2, b2)   # once, at init time

    # Small case implied by the module: batch=2, channels=4, spatial=5x5 -> (2, 100)
    x = jax.random.normal(k_x, (2, 4, 5, 5), jnp.float32)
    logp, v = mininet_forward(x, w_fused, b_fused)
    jax.block_until_ready((logp, v))

    logp_ref, v_ref = _reference(x, w1, b1, w2, b2)
    assert logp.shape == (2, NUM_LOGITS) and v.shape == (2, 1)
    assert jnp.allclose(logp, logp_ref, atol=1e-5), "log_softmax mismatch (small)"
    assert jnp.allclose(v, v_ref, atol=1e-5), "tanh value mismatch (small)"

    # Larger batch: splits into 2 even tiles of 520 rows, no batch padding.
    xb = jax.random.normal(k_big, (1040, 4, 5, 5), jnp.float32)
    logp_b, v_b = mininet_forward(xb, w_fused, b_fused)
    jax.block_until_ready((logp_b, v_b))
    logp_b_ref, v_b_ref = _reference(xb, w1, b1, w2, b2)
    assert jnp.allclose(logp_b, logp_b_ref, atol=1e-5), "log_softmax mismatch (gridded)"
    assert jnp.allclose(v_b, v_b_ref, atol=1e-5), "tanh value mismatch (gridded)"

    # Ragged batch: exercises the clamped edge block (B=67 -> 2 tiles of 40 rows).
    xr = jax.random.normal(k_rag, (67, 4, 5, 5), jnp.float32)
    logp_r, v_r = mininet_forward(xr, w_fused, b_fused)
    jax.block_until_ready((logp_r, v_r))
    logp_r_ref, v_r_ref = _reference(xr, w1, b1, w2, b2)
    assert jnp.allclose(logp_r, logp_r_ref, atol=1e-5), "log_softmax mismatch (ragged)"
    assert jnp.allclose(v_r, v_r_ref, atol=1e-5), "tanh value mismatch (ragged)"

    print("KERNEL_OK")
</pallas_src>

<mosaic_0001>
module attributes {stable_mosaic.version = 11 : i64} {
  func.func @mininet_kernel(%arg0: i32, %arg1: memref<2x100xf32, #tpu.memory_space<vmem>>, %arg2: memref<100x8xf32, #tpu.memory_space<vmem>>, %arg3: memref<1x8xf32, #tpu.memory_space<vmem>>, %arg4: memref<2x8xf32, #tpu.memory_space<vmem>>) attributes {dimension_semantics = [#tpu.dimension_semantics<parallel>], iteration_bounds = array<i64: 1>, scalar_prefetch = 0 : i64, scratch_operands = 0 : i64, tpu.core_type = #tpu.core_type<tc>, window_params = [{transform_indices = @transform_0, window_bounds = array<i64: 2, 100>}, {pipeline_mode = #tpu.pipeline_mode<synchronous>, transform_indices = @transform_1, window_bounds = array<i64: 100, 8>}, {pipeline_mode = #tpu.pipeline_mode<synchronous>, transform_indices = @transform_2, window_bounds = array<i64: 1, 8>}, {transform_indices = @transform_3, window_bounds = array<i64: 2, 8>}]} {
    %c0 = arith.constant 0 : index
    %c0_0 = arith.constant 0 : index
    %0 = vector.load %arg1[%c0, %c0_0] : memref<2x100xf32, #tpu.memory_space<vmem>>, vector<2x100xf32>
    %c0_1 = arith.constant 0 : index
    %c0_2 = arith.constant 0 : index
    %1 = vector.load %arg2[%c0_1, %c0_2] : memref<100x8xf32, #tpu.memory_space<vmem>>, vector<100x8xf32>
    %cst = arith.constant dense<0.000000e+00> : vector<2x8xf32>
    %2 = tpu.matmul %0, %1, %cst {dimension_numbers = #tpu.dot_dimension_numbers<[1], [0], [0], [1], [0, 0, 1, 1], [], []>} : vector<2x100xf32>, vector<100x8xf32>, vector<2x8xf32> -> vector<2x8xf32>
    %c0_3 = arith.constant 0 : index
    %c0_4 = arith.constant 0 : index
    %3 = vector.load %arg3[%c0_3, %c0_4] : memref<1x8xf32, #tpu.memory_space<vmem>>, vector<1x8xf32>
    %4 = vector.broadcast %3 : vector<1x8xf32> to vector<2x8xf32>
    %5 = arith.addf %2, %4 : vector<2x8xf32>
    %6 = tpu.iota {dimensions = array<i32: 1>} : vector<1x8xi32>
    %c5_i32 = arith.constant 5 : i32
    %7 = vector.broadcast %c5_i32 : i32 to vector<1x8xi32>
    %8 = arith.cmpi slt, %6, %7 : vector<1x8xi32>
    %cst_5 = arith.constant 0xFF800000 : f32
    %9 = vector.shape_cast %8 : vector<1x8xi1> to vector<1x8xi1>
    %10 = vector.broadcast %9 : vector<1x8xi1> to vector<2x8xi1>
    %11 = vector.broadcast %cst_5 : f32 to vector<2x8xf32>
    %12 = arith.select %10, %5, %11 : vector<2x8xi1>, vector<2x8xf32>
    %cst_6 = arith.constant dense<0xFF800000> : vector<2xf32>
    %13 = vector.multi_reduction <maximumf>, %12, %cst_6 [1] : vector<2x8xf32> to vector<2xf32>
    %14 = vector.shape_cast %13 : vector<2xf32> to vector<2x1xf32>
    %15 = vector.broadcast %14 : vector<2x1xf32> to vector<2x8xf32>
    %16 = arith.subf %12, %15 : vector<2x8xf32>
    %17 = math.exp %16 : vector<2x8xf32>
    %cst_7 = arith.constant dense<0.000000e+00> : vector<2xf32>
    %18 = vector.multi_reduction <add>, %17, %cst_7 [1] : vector<2x8xf32> to vector<2xf32>
    %19 = vector.shape_cast %18 : vector<2xf32> to vector<2x1xf32>
    %20 = vector.broadcast %14 : vector<2x1xf32> to vector<2x8xf32>
    %21 = arith.subf %5, %20 : vector<2x8xf32>
    %22 = math.log %19 : vector<2x1xf32>
    %23 = vector.broadcast %22 : vector<2x1xf32> to vector<2x8xf32>
    %24 = arith.subf %21, %23 : vector<2x8xf32>
    %25 = math.tanh %5 : vector<2x8xf32>
    %c5_i32_8 = arith.constant 5 : i32
    %26 = vector.broadcast %c5_i32_8 : i32 to vector<1x8xi32>
    %27 = arith.cmpi eq, %6, %26 : vector<1x8xi32>
    %cst_9 = arith.constant 0.000000e+00 : f32
    %28 = vector.shape_cast %27 : vector<1x8xi1> to vector<1x8xi1>
    %29 = vector.broadcast %28 : vector<1x8xi1> to vector<2x8xi1>
    %30 = vector.broadcast %cst_9 : f32 to vector<2x8xf32>
    %31 = arith.select %29, %25, %30 : vector<2x8xi1>, vector<2x8xf32>
    %32 = vector.shape_cast %8 : vector<1x8xi1> to vector<1x8xi1>
    %33 = vector.broadcast %32 : vector<1x8xi1> to vector<2x8xi1>
    %34 = arith.select %33, %24, %31 : vector<2x8xi1>, vector<2x8xf32>
    %c0_10 = arith.constant 0 : index
    %c0_11 = arith.constant 0 : index
    %35 = vector.load %arg4[%c0_10, %c0_11] : memref<2x8xf32, #tpu.memory_space<vmem>>, vector<2x8xf32>
    tpu.vector_store %arg4[%c0_10, %c0_11], %34 {strides = array<i32>} : memref<2x8xf32, #tpu.memory_space<vmem>>, vector<2x8xf32>,
    return
  }
  func.func @transform_0(%arg0: i32) -> (i32, i32) {
    %c0_i32 = arith.constant 0 : i32
    %c0_i32_0 = arith.constant 0 : i32
    return %arg0, %c0_i32 : i32, i32
  }
  func.func @transform_1(%arg0: i32) -> (i32, i32) {
    %c0_i32 = arith.constant 0 : i32
    %c0_i32_0 = arith.constant 0 : i32
    %c0_i32_1 = arith.constant 0 : i32
    return %c0_i32, %c0_i32_0 : i32, i32
  }
  func.func @transform_2(%arg0: i32) -> (i32, i32) {
    %c0_i32 = arith.constant 0 : i32
    %c0_i32_0 = arith.constant 0 : i32
    %c0_i32_1 = arith.constant 0 : i32
    return %c0_i32, %c0_i32_0 : i32, i32
  }
  func.func @transform_3(%arg0: i32) -> (i32, i32) {
    %c0_i32 = arith.constant 0 : i32
    %c0_i32_0 = arith.constant 0 : i32
    return %arg0, %c0_i32 : i32, i32
  }
}

</mosaic_0001>

<llo_original>
// kernel: mininet_forward.1
$region0: #{mininet_forward.1}
  #allocation0 [shape = 'u32[]', space=smem, size = 0x4, offset = 0x4, fixed_abs, tag = 'smem constant byte address 0x4 - core index']
  #allocation1 [shape = 'u32[72,128]{1,0:T(1,128)}', space=vmem, size = 0x9000, scoped, tag = 'internal scratch']
  %s0 = inlined_call_operand.vmem [shape: f32[2,100], index: 0, kind: input, shape index: {}]
  %s1 = inlined_call_operand.vmem [shape: f32[100,8], index: 1, kind: input, shape index: {}]
  %s2 = inlined_call_operand.vmem [shape: f32[1,8], index: 2, kind: input, shape index: {}]
  %s3 = inlined_call_operand.vmem [shape: f32[2,8], index: 3, kind: output, shape index: {}]
  %s4 = sld [smem:[#allocation0]]
  $region22: #{mininet_forward.1} parent=0
    _
  %s6 = ssub.s32 1, %s4
  %s7 = scalar_select 0, %s6, %s4
  // Predicated region
  $region2: #{mininet_forward.1} parent=0 // pred_check
    _
  $region3: #{mininet_forward.1} parent=0 // pred_check_branch
    %9 = sbr.rel (0) target = $region5
  $region4: #{mininet_forward.1} parent=0 // pred_region
    _
  $region5: #{mininet_forward.1} parent=0 // pred_fallthru
    _
  // Predicated region
  $region6: #{mininet_forward.1} parent=0 // pred_check
    _
  $region7: #{mininet_forward.1} parent=0 // pred_check_branch
    %11 = sbr.rel (0) target = $region9
  $region8: #{mininet_forward.1} parent=0 // pred_region
    _
  $region9: #{mininet_forward.1} parent=0 // pred_fallthru
    _
  // Predicated region
  $region10: #{mininet_forward.1} parent=0 // pred_check
    _
  $region11: #{mininet_forward.1} parent=0 // pred_check_branch
    %13 = sbr.rel (0) target = $region13
  $region12: #{mininet_forward.1} parent=0 // pred_region
    _
  $region13: #{mininet_forward.1} parent=0 // pred_fallthru
    _
  %v14 = vld [vmem:[%s0] sm:$0x3]
  %v15 = vld [vmem:[%s1] sm:$0xff]
  %v16 = vld [vmem:[%s1 + $0x8] sm:$0xff]
  %v17 = vld [vmem:[%s1 + $0x10] sm:$0xff]
  %v18 = vld [vmem:[%s1 + $0x18] sm:$0xff]
  %v19 = vld [vmem:[%s1 + $0x20] sm:$0xff]
  %v20 = vld [vmem:[%s1 + $0x28] sm:$0xff]
  %v21 = vld [vmem:[%s1 + $0x30] sm:$0xff]
  %v22 = vld [vmem:[%s1 + $0x38] sm:$0xff]
  %v23 = vld [vmem:[%s1 + $0x40] sm:$0xff]
  %v24 = vld [vmem:[%s1 + $0x48] sm:$0xff]
  %v25 = vld [vmem:[%s1 + $0x50] sm:$0xff]
  %v26 = vld [vmem:[%s1 + $0x58] sm:$0xff]
  %v27 = vld [vmem:[%s1 + $0x60] sm:$0xf]
  %v28 = vld [vmem:[%s2] sm:$0x1]
  %v30 = vperm.slane %v28, 0
  %vm32 = vcmask 818176
  %v34 = vsel %vm32, %v14, 0
  %vm36 = vcmask 1043456
  %v38 = vsel %vm36, %v27, 0
  %40 = vmatpush.msra.mxu0 0.0
  %41 = vmatpush.msra.mxu0 0.0
  %42 = vmatpush.msra.mxu0 0.0
  %43 = vmatpush.msra.mxu0 %v38
  %44 = vmatpush.msra.mxu0 %v26
  %45 = vmatpush.msra.mxu0 %v25
  %46 = vmatpush.msra.mxu0 %v24
  %47 = vmatpush.msra.mxu0 %v23
  %48 = vmatpush.msra.mxu0 %v22
  %49 = vmatpush.msra.mxu0 %v21
  %50 = vmatpush.msra.mxu0 %v20
  %51 = vmatpush.msra.mxu0 %v19
  %52 = vmatpush.msra.mxu0 %v18
  %53 = vmatpush.msra.mxu0 %v17
  %54 = vmatpush.msra.mxu0 %v16
  %55 = vmatpush.msra.mxu0 %v15
  %56 = vmatmul.f32.gmra.mxu0 %v34
  %v57 = vpop.f32.mrf.mxu0
  %v58 = vadd.f32 %v30, %v57
  %59 = vdwg.mxu0
  %v60 = vlaneseq
  %v61 = vand.u32 %v60, 127
  %vm62 = vcmp.lt.s32.totalorder %v61, 5
  %v63 = vsel %vm62, 1, 0
  %vm64 = vcmp.eq.s32.totalorder %v63, 1
  %v65 = vsel %vm64, %v58, -inf
  %vm66 = vcmask 58368
  %v67 = vsel %vm66, %v65, -inf
  %68 = vmax.xlane.f32.xlu0 %v67
  %v69 = vpop.xlane.xlu0 %68
  %v70 = vsub.f32 %v65, %v69
  %v71 = vmul.f32 %v70, 1.442695
  %v72 = vpow.pop %v71
  %v73 = vsel %vm66, %v72, 0.0
  %74 = vadd.xlane.f32.xlu0 %v73
  %v75 = vpop.xlane.xlu0 %74
  %v76 = vsub.f32 %v58, %v69
  %v77 = vlog2.pop %v75
  %v78 = vmul.f32 %v77, 0.6931472
  %v79 = vsub.f32 %v76, %v78
  %v80 = vtanh.pop %v58
  %vm81 = vcmp.eq.s32.totalorder %v61, 5
  %v82 = vsel %vm81, 1, 0
  %vm83 = vcmp.eq.s32.totalorder %v82, 1
  %v84 = vsel %vm83, %v80, 0.0
  %v85 = vsel %vm64, %v79, %v84
  %86 = vst.msk [vmem:[%s3] sm:$0x3] %vm66, %v85
  // Predicated region
  $region14: #{mininet_forward.1} parent=0 // pred_check
    _
  $region15: #{mininet_forward.1} parent=0 // pred_check_branch
    %88 = sbr.rel (0) target = $region17
  $region16: #{mininet_forward.1} parent=0 // pred_region
    _
  $region17: #{mininet_forward.1} parent=0 // pred_fallthru
    _
  // Predicated region
  $region18: #{mininet_forward.1} parent=0 // pred_check
    _
  $region19: #{mininet_forward.1} parent=0 // pred_check_branch
    %90 = sbr.rel (0) target = $region21
  $region20: #{mininet_forward.1} parent=0 // pred_region
    _
  $region21: #{mininet_forward.1} parent=0 // pred_fallthru
    _

</llo_original>
